<compile_context>
chip_gen: v5e
topology: v5e:2x2
jax: 0.10.0
libtpu: 0.0.40
codegen_flags: <defaults>
</compile_context>

<pallas_src>
import functools

import jax
import jax.numpy as jnp
from jax.experimental import pallas as pl
from jax.experimental.pallas import tpu as pltpu


def _round_up(x: int, m: int) -> int:
    return ((x + m - 1) // m) * m


def _crd_loss_kernel(s_ref, t_ref, out_ref, m_sc, l_sc, d_sc, *,
                     inv_temperature: float, b_real: int, tile: int,
                     mask_cols: bool, mm_dtype):
    qi = pl.program_id(0)
    ki = pl.program_id(1)

    @pl.when(ki == 0)
    def _init():
        m_sc[...] = jnp.full_like(m_sc, -jnp.inf)
        l_sc[...] = jnp.zeros_like(l_sc)
        d_sc[...] = jnp.zeros_like(d_sc)

    s = s_ref[...].astype(jnp.float32)            # [T, D]
    t = t_ref[...].astype(jnp.float32)            # [T, D]

    # Row-wise L2 normalization via rsqrt (EUP); rsqrt(max(ss, eps^2)) is
    # exactly 1 / max(||v||, eps), matching F.normalize's default clamp.
    eps = jnp.float32(1e-12)
    inv_s = jax.lax.rsqrt(
        jnp.maximum(jnp.sum(s * s, axis=1, keepdims=True), eps * eps))
    inv_t = jax.lax.rsqrt(
        jnp.maximum(jnp.sum(t * t, axis=1, keepdims=True), eps * eps))
    s_n = s * inv_s
    t_n = t * inv_t

    inv_temp = jnp.float32(inv_temperature)

    # Contract on the last dim of both operands: no materialized transpose.
    logits = jax.lax.dot_general(
        s_n.astype(mm_dtype), t_n.astype(mm_dtype),
        dimension_numbers=(((1,), (1,)), ((), ())),
        preferred_element_type=jnp.float32) * inv_temp      # [T, T]

    if mask_cols:  # static: only emitted when the batch was padded
        col = ki * tile + jax.lax.broadcasted_iota(jnp.int32, logits.shape, 1)
        logits = jnp.where(col < b_real, logits, jnp.float32(-jnp.inf))

    # Diagonal (positive-pair) term lives only in the qi == ki block.
    @pl.when(ki == qi)
    def _diag():
        d_sc[...] = jnp.sum(s_n * t_n, axis=1, keepdims=True) * inv_temp

    # Online (flash-style) logsumexp update.
    m_prev = m_sc[...]
    m_new = jnp.maximum(m_prev, jnp.max(logits, axis=1, keepdims=True))
    alpha = jnp.exp(m_prev - m_new)
    l_sc[...] = (alpha * l_sc[...]
                 + jnp.sum(jnp.exp(logits - m_new), axis=1, keepdims=True))
    m_sc[...] = m_new

    @pl.when(ki == pl.num_programs(1) - 1)
    def _finalize():
        # per-row loss = logsumexp(row) - logits[i, i]
        out_ref[...] = m_sc[...] + jnp.log(l_sc[...]) - d_sc[...]


def crd_loss(s_feat: jax.Array, t_feat: jax.Array,
             temperature: float = 0.07, *, tile: int = 256) -> jax.Array:
    """Pallas TPU implementation of the simplified CRD loss.

    Args:
      s_feat: student features, shape [B, D].
      t_feat: teacher features, shape [B, D].
      temperature: softmax temperature (static).
      tile: target (q, k) tile size for the online-softmax grid.

    Returns:
      Scalar float32 loss.
    """
    assert s_feat.shape == t_feat.shape and s_feat.ndim == 2
    B, D = s_feat.shape

    # bf16 inputs go to the MXU in bf16 (big win on v5e); f32 inputs keep an
    # exact f32 matmul path so semantics match the PyTorch reference.
    mm_dtype = (jnp.bfloat16
                if (s_feat.dtype == jnp.bfloat16 and t_feat.dtype == jnp.bfloat16)
                else jnp.float32)

    # (8, 128)-aligned padding. Zero rows/cols don't change norms or dot
    # products; padded key columns are masked in-kernel, padded query rows
    # are dropped before the mean.
    if B <= tile:
        T = _round_up(B, 8)
        B_pad = T
    else:
        T = tile
        B_pad = _round_up(B, T)
    D_pad = _round_up(D, 128)

    if (B_pad, D_pad) != (B, D):
        pad = ((0, B_pad - B), (0, D_pad - D))
        s_feat = jnp.pad(s_feat, pad)
        t_feat = jnp.pad(t_feat, pad)

    nq = B_pad // T
    nk = B_pad // T

    kernel = functools.partial(
        _crd_loss_kernel,
        inv_temperature=1.0 / float(temperature),
        b_real=B,
        tile=T,
        mask_cols=(B_pad != B),
        mm_dtype=mm_dtype,
    )

    item = jnp.dtype(s_feat.dtype).itemsize
    cost = pl.CostEstimate(
        flops=2 * B_pad * B_pad * D_pad + 8 * B_pad * B_pad,
        transcendentals=B_pad * B_pad + 2 * B_pad,
        bytes_accessed=(nq + nk) * B_pad * D_pad * item + B_pad * 4,
    )

    # Size the scoped VMEM budget explicitly (stay within v7x's 64 MiB).
    vmem_limit = int(min(64 * 1024 * 1024,
                         max(32 * 1024 * 1024,
                             6 * T * D_pad * item + 8 * T * T * 4)))

    per_row = pl.pallas_call(
        kernel,
        out_shape=jax.ShapeDtypeStruct((B_pad, 1), jnp.float32),
        grid_spec=pltpu.PrefetchScalarGridSpec(
            num_scalar_prefetch=0,
            grid=(nq, nk),
            in_specs=[
                pl.BlockSpec((T, D_pad), lambda qi, ki: (qi, 0)),   # student q-tile
                pl.BlockSpec((T, D_pad), lambda qi, ki: (ki, 0)),   # teacher k-tile
            ],
            out_specs=pl.BlockSpec((T, 1), lambda qi, ki: (qi, 0)),
            scratch_shapes=[pltpu.VMEM((T, 1), jnp.float32)] * 3,   # m, l, diag
        ),
        compiler_params=pltpu.CompilerParams(
            dimension_semantics=("parallel", "arbitrary"),
            vmem_limit_bytes=vmem_limit,
        ),
        cost_estimate=cost,
    )(s_feat, t_feat)

    # Reduce outside the kernel: keeps the q axis parallel across TensorCores
    # and drops padded rows before the mean.
    return jnp.sum(per_row[:B, 0]) / jnp.float32(B)


def _crd_loss_ref(s_feat, t_feat, temperature=0.07):
    """Pure-JAX reference mirroring the PyTorch module."""
    s = s_feat.astype(jnp.float32)
    t = t_feat.astype(jnp.float32)
    s = s / jnp.maximum(jnp.linalg.norm(s, axis=1, keepdims=True), 1e-12)
    t = t / jnp.maximum(jnp.linalg.norm(t, axis=1, keepdims=True), 1e-12)
    logits = jnp.matmul(s, t.T, precision=jax.lax.Precision.HIGHEST) / temperature
    log_probs = jax.nn.log_softmax(logits, axis=1)
    b = s.shape[0]
    return -jnp.mean(log_probs[jnp.arange(b), jnp.arange(b)])


if __name__ == "__main__":
    # Small, deterministic example: batch=8 student/teacher feature vectors of
    # hidden size 32 (the forward only requires 2-D [B, D] feats).
    key = jax.random.PRNGKey(0)
    k_s, k_t = jax.random.split(key)
    B, D = 8, 32
    s_feat = jax.random.normal(k_s, (B, D), dtype=jnp.float32)
    t_feat = jax.random.normal(k_t, (B, D), dtype=jnp.float32)

    loss = crd_loss(s_feat, t_feat, temperature=0.07)
    jax.block_until_ready(loss)

    ref = _crd_loss_ref(s_feat, t_feat, temperature=0.07)
    assert jnp.allclose(loss, ref, rtol=1e-4, atol=1e-4), (loss, ref)

    print("KERNEL_OK")
</pallas_src>

<mosaic_0001>
module attributes {stable_mosaic.version = 11 : i64} {
  func.func @_crd_loss_kernel(%arg0: i32, %arg1: i32, %arg2: memref<8x128xf32, #tpu.memory_space<vmem>>, %arg3: memref<8x128xf32, #tpu.memory_space<vmem>>, %arg4: memref<8x1xf32, #tpu.memory_space<vmem>>, %arg5: memref<8x1xf32, #tpu.memory_space<vmem>>, %arg6: memref<8x1xf32, #tpu.memory_space<vmem>>, %arg7: memref<8x1xf32, #tpu.memory_space<vmem>>) attributes {dimension_semantics = [#tpu.dimension_semantics<parallel>, #tpu.dimension_semantics<arbitrary>], iteration_bounds = array<i64: 1, 1>, scalar_prefetch = 0 : i64, scratch_operands = 3 : i64, tpu.core_type = #tpu.core_type<tc>, window_params = [{transform_indices = @transform_0, window_bounds = array<i64: 8, 128>}, {transform_indices = @transform_1, window_bounds = array<i64: 8, 128>}, {transform_indices = @transform_2, window_bounds = array<i64: 8, 1>}]} {
    %c0_i32 = arith.constant 0 : i32
    %0 = arith.cmpi eq, %arg1, %c0_i32 : i32
    %1 = arith.extui %0 : i1 to i32
    %c0_i32_0 = arith.constant 0 : i32
    %2 = arith.cmpi ne, %1, %c0_i32_0 : i32
    scf.if %2 {
      %cst_25 = arith.constant 0xFF800000 : f32
      %48 = vector.broadcast %cst_25 : f32 to vector<8x1xf32>
      %c0_26 = arith.constant 0 : index
      %c0_27 = arith.constant 0 : index
      %49 = vector.load %arg5[%c0_26, %c0_27] : memref<8x1xf32, #tpu.memory_space<vmem>>, vector<8x1xf32>
      tpu.vector_store %arg5[%c0_26, %c0_27], %48 {strides = array<i32>} : memref<8x1xf32, #tpu.memory_space<vmem>>, vector<8x1xf32>,
      %cst_28 = arith.constant 0.000000e+00 : f32
      %50 = vector.broadcast %cst_28 : f32 to vector<8x1xf32>
      %c0_29 = arith.constant 0 : index
      %c0_30 = arith.constant 0 : index
      %51 = vector.load %arg6[%c0_29, %c0_30] : memref<8x1xf32, #tpu.memory_space<vmem>>, vector<8x1xf32>
      tpu.vector_store %arg6[%c0_29, %c0_30], %50 {strides = array<i32>} : memref<8x1xf32, #tpu.memory_space<vmem>>, vector<8x1xf32>,
      %cst_31 = arith.constant 0.000000e+00 : f32
      %52 = vector.broadcast %cst_31 : f32 to vector<8x1xf32>
      %c0_32 = arith.constant 0 : index
      %c0_33 = arith.constant 0 : index
      %53 = vector.load %arg7[%c0_32, %c0_33] : memref<8x1xf32, #tpu.memory_space<vmem>>, vector<8x1xf32>
      tpu.vector_store %arg7[%c0_32, %c0_33], %52 {strides = array<i32>} : memref<8x1xf32, #tpu.memory_space<vmem>>, vector<8x1xf32>,
    } else {
    }
    %c0 = arith.constant 0 : index
    %c0_1 = arith.constant 0 : index
    %3 = vector.load %arg2[%c0, %c0_1] : memref<8x128xf32, #tpu.memory_space<vmem>>, vector<8x128xf32>
    %c0_2 = arith.constant 0 : index
    %c0_3 = arith.constant 0 : index
    %4 = vector.load %arg3[%c0_2, %c0_3] : memref<8x128xf32, #tpu.memory_space<vmem>>, vector<8x128xf32>
    %5 = arith.mulf %3, %3 : vector<8x128xf32>
    %cst = arith.constant dense<0.000000e+00> : vector<8xf32>
    %6 = vector.multi_reduction <add>, %5, %cst [1] : vector<8x128xf32> to vector<8xf32>
    %7 = vector.shape_cast %6 : vector<8xf32> to vector<8x1xf32>
    %cst_4 = arith.constant 9.99999996E-13 : f32
    %cst_5 = arith.constant 9.99999996E-13 : f32
    %8 = arith.mulf %cst_4, %cst_5 : f32
    %9 = vector.broadcast %8 : f32 to vector<8x1xf32>
    %10 = arith.maximumf %7, %9 : vector<8x1xf32>
    %11 = math.rsqrt %10 : vector<8x1xf32>
    %12 = arith.mulf %4, %4 : vector<8x128xf32>
    %cst_6 = arith.constant dense<0.000000e+00> : vector<8xf32>
    %13 = vector.multi_reduction <add>, %12, %cst_6 [1] : vector<8x128xf32> to vector<8xf32>
    %14 = vector.shape_cast %13 : vector<8xf32> to vector<8x1xf32>
    %cst_7 = arith.constant 9.99999996E-13 : f32
    %cst_8 = arith.constant 9.99999996E-13 : f32
    %15 = arith.mulf %cst_7, %cst_8 : f32
    %16 = vector.broadcast %15 : f32 to vector<8x1xf32>
    %17 = arith.maximumf %14, %16 : vector<8x1xf32>
    %18 = math.rsqrt %17 : vector<8x1xf32>
    %19 = vector.broadcast %11 : vector<8x1xf32> to vector<8x128xf32>
    %20 = arith.mulf %3, %19 : vector<8x128xf32>
    %21 = vector.broadcast %18 : vector<8x1xf32> to vector<8x128xf32>
    %22 = arith.mulf %4, %21 : vector<8x128xf32>
    %cst_9 = arith.constant dense<0.000000e+00> : vector<8x8xf32>
    %23 = tpu.matmul %20, %22, %cst_9 {dimension_numbers = #tpu.dot_dimension_numbers<[1], [1], [0], [0], [0, 0, 1, 0], [], []>} : vector<8x128xf32>, vector<8x128xf32>, vector<8x8xf32> -> vector<8x8xf32>
    %cst_10 = arith.constant 14.2857141 : f32
    %24 = vector.broadcast %cst_10 : f32 to vector<8x8xf32>
    %25 = arith.mulf %23, %24 : vector<8x8xf32>
    %26 = arith.cmpi eq, %arg1, %arg0 : i32
    %27 = arith.extui %26 : i1 to i32
    %cst_11 = arith.constant 14.2857141 : f32
    %c0_i32_12 = arith.constant 0 : i32
    %28 = arith.cmpi ne, %27, %c0_i32_12 : i32
    scf.if %28 {
      %48 = arith.mulf %20, %22 : vector<8x128xf32>
      %cst_25 = arith.constant dense<0.000000e+00> : vector<8xf32>
      %49 = vector.multi_reduction <add>, %48, %cst_25 [1] : vector<8x128xf32> to vector<8xf32>
      %50 = vector.shape_cast %49 : vector<8xf32> to vector<8x1xf32>
      %51 = vector.broadcast %cst_11 : f32 to vector<8x1xf32>
      %52 = arith.mulf %50, %51 : vector<8x1xf32>
      %c0_26 = arith.constant 0 : index
      %c0_27 = arith.constant 0 : index
      %53 = vector.load %arg7[%c0_26, %c0_27] : memref<8x1xf32, #tpu.memory_space<vmem>>, vector<8x1xf32>
      tpu.vector_store %arg7[%c0_26, %c0_27], %52 {strides = array<i32>} : memref<8x1xf32, #tpu.memory_space<vmem>>, vector<8x1xf32>,
    } else {
    }
    %c0_13 = arith.constant 0 : index
    %c0_14 = arith.constant 0 : index
    %29 = vector.load %arg5[%c0_13, %c0_14] : memref<8x1xf32, #tpu.memory_space<vmem>>, vector<8x1xf32>
    %cst_15 = arith.constant dense<0xFF800000> : vector<8xf32>
    %30 = vector.multi_reduction <maximumf>, %25, %cst_15 [1] : vector<8x8xf32> to vector<8xf32>
    %31 = vector.shape_cast %30 : vector<8xf32> to vector<8x1xf32>
    %32 = arith.maximumf %29, %31 : vector<8x1xf32>
    %33 = arith.subf %29, %32 : vector<8x1xf32>
    %34 = math.exp %33 : vector<8x1xf32>
    %c0_16 = arith.constant 0 : index
    %c0_17 = arith.constant 0 : index
    %35 = vector.load %arg6[%c0_16, %c0_17] : memref<8x1xf32, #tpu.memory_space<vmem>>, vector<8x1xf32>
    %36 = arith.mulf %34, %35 : vector<8x1xf32>
    %37 = vector.broadcast %32 : vector<8x1xf32> to vector<8x8xf32>
    %38 = arith.subf %25, %37 : vector<8x8xf32>
    %39 = math.exp %38 : vector<8x8xf32>
    %cst_18 = arith.constant dense<0.000000e+00> : vector<8xf32>
    %40 = vector.multi_reduction <add>, %39, %cst_18 [1] : vector<8x8xf32> to vector<8xf32>
    %41 = vector.shape_cast %40 : vector<8xf32> to vector<8x1xf32>
    %42 = arith.addf %36, %41 : vector<8x1xf32>
    %c0_19 = arith.constant 0 : index
    %c0_20 = arith.constant 0 : index
    %43 = vector.load %arg6[%c0_19, %c0_20] : memref<8x1xf32, #tpu.memory_space<vmem>>, vector<8x1xf32>
    tpu.vector_store %arg6[%c0_19, %c0_20], %42 {strides = array<i32>} : memref<8x1xf32, #tpu.memory_space<vmem>>, vector<8x1xf32>,
    %c0_21 = arith.constant 0 : index
    %c0_22 = arith.constant 0 : index
    %44 = vector.load %arg5[%c0_21, %c0_22] : memref<8x1xf32, #tpu.memory_space<vmem>>, vector<8x1xf32>
    tpu.vector_store %arg5[%c0_21, %c0_22], %32 {strides = array<i32>} : memref<8x1xf32, #tpu.memory_space<vmem>>, vector<8x1xf32>,
    %c0_i32_23 = arith.constant 0 : i32
    %45 = arith.cmpi eq, %arg1, %c0_i32_23 : i32
    %46 = arith.extui %45 : i1 to i32
    %c0_i32_24 = arith.constant 0 : i32
    %47 = arith.cmpi ne, %46, %c0_i32_24 : i32
    scf.if %47 {
      %c0_25 = arith.constant 0 : index
      %c0_26 = arith.constant 0 : index
      %48 = vector.load %arg5[%c0_25, %c0_26] : memref<8x1xf32, #tpu.memory_space<vmem>>, vector<8x1xf32>
      %c0_27 = arith.constant 0 : index
      %c0_28 = arith.constant 0 : index
      %49 = vector.load %arg6[%c0_27, %c0_28] : memref<8x1xf32, #tpu.memory_space<vmem>>, vector<8x1xf32>
      %50 = math.log %49 : vector<8x1xf32>
      %51 = arith.addf %48, %50 : vector<8x1xf32>
      %c0_29 = arith.constant 0 : index
      %c0_30 = arith.constant 0 : index
      %52 = vector.load %arg7[%c0_29, %c0_30] : memref<8x1xf32, #tpu.memory_space<vmem>>, vector<8x1xf32>
      %53 = arith.subf %51, %52 : vector<8x1xf32>
      %c0_31 = arith.constant 0 : index
      %c0_32 = arith.constant 0 : index
      %54 = vector.load %arg4[%c0_31, %c0_32] : memref<8x1xf32, #tpu.memory_space<vmem>>, vector<8x1xf32>
      tpu.vector_store %arg4[%c0_31, %c0_32], %53 {strides = array<i32>} : memref<8x1xf32, #tpu.memory_space<vmem>>, vector<8x1xf32>,
    } else {
    }
    return
  }
  func.func @transform_0(%arg0: i32, %arg1: i32) -> (i32, i32) {
    %c0_i32 = arith.constant 0 : i32
    %c0_i32_0 = arith.constant 0 : i32
    return %arg0, %c0_i32 : i32, i32
  }
  func.func @transform_1(%arg0: i32, %arg1: i32) -> (i32, i32) {
    %c0_i32 = arith.constant 0 : i32
    %c0_i32_0 = arith.constant 0 : i32
    return %arg1, %c0_i32 : i32, i32
  }
  func.func @transform_2(%arg0: i32, %arg1: i32) -> (i32, i32) {
    %c0_i32 = arith.constant 0 : i32
    %c0_i32_0 = arith.constant 0 : i32
    return %arg0, %c0_i32 : i32, i32
  }
}

</mosaic_0001>

<llo_original>
// kernel: tpu_custom_call.1
$region0: #{tpu_custom_call.1}
  #allocation0 [shape = 'u32[]', space=smem, size = 0x4, offset = 0x4, fixed_abs, tag = 'smem constant byte address 0x4 - core index']
  #allocation1 [shape = 'u32[72,128]{1,0:T(1,128)}', space=vmem, size = 0x9000, scoped, tag = 'internal scratch']
  #allocation2 [shape = 'f32[8,1]{1,0:T(8,128)}', space=vmem, size = 0x1000, scoped, tag = 'scratch operand']
  #allocation3 [shape = 'f32[8,1]{1,0:T(8,128)}', space=vmem, size = 0x1000, scoped, tag = 'scratch operand']
  #allocation4 [shape = 'f32[8,1]{1,0:T(8,128)}', space=vmem, size = 0x1000, scoped, tag = 'scratch operand']
  %s0 = inlined_call_operand.hbm [shape: f32[8,128], index: 0, kind: input, shape index: {}]
  %s1 = inlined_call_operand.hbm [shape: f32[8,128], index: 1, kind: input, shape index: {}]
  %s2 = inlined_call_operand.vmem [shape: f32[8,1], index: 2, kind: output, shape index: {}]
  %s3 = sld [smem:[#allocation0]]
  $region38: #{tpu_custom_call.1} parent=0
    _
  %s5 = ssub.s32 1, %s3
  %s6 = scalar_select 0, %s5, %s3
  $region1: #{tpu_custom_call.1} parent=0
    #allocation5 [shape = 'u8[4096]{0}', space=vmem, size = 0x1000, scoped, tag = 'input window, operand 0, single buffered']
    #allocation6 [shape = 's32[1]{0}', space=sflag, size = 0x4, scoped, tag = 'scoped memory for tpu_custom_call.1']
    #allocation7 [shape = 'u8[4096]{0}', space=vmem, size = 0x1000, scoped, tag = 'input window, operand 1, single buffered']
    #allocation8 [shape = 's32[1]{0}', space=sflag, size = 0x4, scoped, tag = 'scoped memory for tpu_custom_call.1']
    %7 = vsyncpa [#allocation6], 0
    %8 = vsyncpa [#allocation8], 0
    // Predicated region
    $region2: #{tpu_custom_call.1} parent=1 // pred_check
      _
    $region3: #{tpu_custom_call.1} parent=1 // pred_check_branch
      %10 = sbr.rel (0) target = $region5
    $region4: #{tpu_custom_call.1} parent=1 // pred_region
      %12 = vsyncadd [#allocation6], 0
      %s14 = sshll.u32 %s0, 4
      %s15 = int_to_ptr.hbm [resolvable:$true] %s14
      %s16 = sshll.u32 [#allocation5], 4
      %s17 = int_to_ptr.vmem [resolvable:$true] %s16
      %19 = dma.hbm_to_vmem [thread:$0]  %s15, 128, %s17, [#allocation6]
    $region5: #{tpu_custom_call.1} parent=1 // pred_fallthru
      _
    // Predicated region
    $region6: #{tpu_custom_call.1} parent=1 // pred_check
      _
    $region7: #{tpu_custom_call.1} parent=1 // pred_check_branch
      %21 = sbr.rel (0) target = $region9
    $region8: #{tpu_custom_call.1} parent=1 // pred_region
      %23 = vsyncadd [#allocation8], 0
      %s25 = sshll.u32 %s1, 4
      %s26 = int_to_ptr.hbm [resolvable:$true] %s25
      %s27 = sshll.u32 [#allocation7], 4
      %s28 = int_to_ptr.vmem [resolvable:$true] %s27
      %30 = dma.hbm_to_vmem [thread:$0]  %s26, 128, %s28, [#allocation8]
    $region9: #{tpu_custom_call.1} parent=1 // pred_fallthru
      _
    // Predicated region
    $region10: #{tpu_custom_call.1} parent=1 // pred_check
      _
    $region11: #{tpu_custom_call.1} parent=1 // pred_check_branch
      %32 = sbr.rel (0) target = $region13
    $region12: #{tpu_custom_call.1} parent=1 // pred_region
      %34 = dma.done [#allocation6], 128
    $region13: #{tpu_custom_call.1} parent=1 // pred_fallthru
      _
    // Predicated region
    $region14: #{tpu_custom_call.1} parent=1 // pred_check
      _
    $region15: #{tpu_custom_call.1} parent=1 // pred_check_branch
      %36 = sbr.rel (0) target = $region17
    $region16: #{tpu_custom_call.1} parent=1 // pred_region
      %38 = dma.done [#allocation8], 128
    $region17: #{tpu_custom_call.1} parent=1 // pred_fallthru
      _
    %p39 = scmp.eq.s32.totalorder 0, 0
    // Predicated region
    $region18: #{tpu_custom_call.1} parent=1 // pred_check
      %p40 = pneg %p39
    $region19: #{tpu_custom_call.1} parent=1 // pred_check_branch
      %42 = sbr.rel (%p40) target = $region21
    $region20: #{tpu_custom_call.1} parent=1 // pred_region
      %vm43 = vcmask 7168
      %44 = vst.msk [vmem:[#allocation2] sm:$0xff] %vm43, -inf
      %45 = vst.msk [vmem:[#allocation3] sm:$0xff] %vm43, 0.0
      %46 = vst.msk [vmem:[#allocation4] sm:$0xff] %vm43, 0.0
    $region21: #{tpu_custom_call.1} parent=1 // pred_fallthru
      _
    %v47 = vld [vmem:[#allocation5] sm:$0xff]
    %v48 = vld [vmem:[#allocation7] sm:$0xff]
    %v49 = vmul.f32 %v47, %v47
    %50 = vadd.xlane.f32.xlu0 %v49
    %v51 = vpop.xlane.xlu0 %50
    %v52 = vmax.f32 %v51, 1e-24
    %v53 = vrsqrt.pop %v52
    %v54 = vmul.f32 %v53, %v52
    %v55 = vmul.f32 %v54, %v53
    %v56 = vmul.f32 0.5, %v55
    %v57 = vsub.f32 1.5, %v56
    %v58 = vmul.f32 %v53, %v57
    %vm59 = vweird.f32 %v52
    %vm60 = vweird.f32 %v53
    %vm61 = vmor %vm59, %vm60
    %v62 = vsel %vm61, %v53, %v58
    %v63 = vmul.f32 %v48, %v48
    %64 = vadd.xlane.f32.xlu0 %v63
    %v65 = vpop.xlane.xlu0 %64
    %v66 = vmax.f32 %v65, 1e-24
    %v67 = vrsqrt.pop %v66
    %v68 = vmul.f32 %v67, %v66
    %v69 = vmul.f32 %v68, %v67
    %v70 = vmul.f32 0.5, %v69
    %v71 = vsub.f32 1.5, %v70
    %v72 = vmul.f32 %v67, %v71
    %vm73 = vweird.f32 %v66
    %vm74 = vweird.f32 %v67
    %vm75 = vmor %vm73, %vm74
    %v76 = vsel %vm75, %v67, %v72
    %v77 = vmul.f32 %v47, %v62
    %v78 = vmul.f32 %v48, %v76
    %79 = vmatpush.xpose.msra.mxu0 0.0
    %80 = vmatpush.xpose.msra.mxu0 0.0
    %81 = vmatpush.xpose.msra.mxu0 0.0
    %82 = vmatpush.xpose.msra.mxu0 0.0
    %83 = vmatpush.xpose.msra.mxu0 0.0
    %84 = vmatpush.xpose.msra.mxu0 0.0
    %85 = vmatpush.xpose.msra.mxu0 0.0
    %86 = vmatpush.xpose.msra.mxu0 0.0
    %87 = vmatpush.xpose.msra.mxu0 0.0
    %88 = vmatpush.xpose.msra.mxu0 0.0
    %89 = vmatpush.xpose.msra.mxu0 0.0
    %90 = vmatpush.xpose.msra.mxu0 0.0
    %91 = vmatpush.xpose.msra.mxu0 0.0
    %92 = vmatpush.xpose.msra.mxu0 0.0
    %93 = vmatpush.xpose.msra.mxu0 0.0
    %94 = vmatpush.xpose.msra.mxu0 %v78
    %95 = vmatmul.f32.gmra.mxu0 %v77
    %v96 = vpop.f32.mrf.mxu0
    %v97 = vadd.f32 0.0, %v96
    %98 = vdwg.mxu0
    %v99 = vmul.f32 %v97, 14.285714
    %p100 = scmp.eq.s32.totalorder 0, 0
    // Predicated region
    $region22: #{tpu_custom_call.1} parent=1 // pred_check
      %p101 = pneg %p100
    $region23: #{tpu_custom_call.1} parent=1 // pred_check_branch
      %103 = sbr.rel (%p101) target = $region25
    $region24: #{tpu_custom_call.1} parent=1 // pred_region
      %v104 = vmul.f32 %v77, %v78
      %105 = vadd.xlane.f32.xlu0 %v104
      %v106 = vpop.xlane.xlu0 %105
      %v107 = vmul.f32 %v106, 14.285714
      %vm108 = vcmask 7168
      %109 = vst.msk [vmem:[#allocation4] sm:$0xff] %vm108, %v107
    $region25: #{tpu_custom_call.1} parent=1 // pred_fallthru
      _
    %v110 = vld [vmem:[#allocation2] sm:$0xff]
    %vm111 = vcmask 64512
    %v112 = vsel %vm111, %v99, -inf
    %113 = vmax.xlane.f32.xlu0 %v112
    %v114 = vpop.xlane.xlu0 %113
    %v115 = vmax.f32 %v110, %v114
    %v116 = vsub.f32 %v110, %v115
    %v117 = vmul.f32 %v116, 1.442695
    %v118 = vpow.pop %v117
    %v119 = vld [vmem:[#allocation3] sm:$0xff]
    %v120 = vmul.f32 %v118, %v119
    %122 = vset.pattern.permute.xlu0 0
    %123 = vperm.xlu0 %122, %v115
    %v124 = vpop.permute.xlu0 %123
    %v126 = vsub.f32 %v99, %v124
    %v127 = vmul.f32 %v126, 1.442695
    %v128 = vpow.pop %v127
    %v129 = vsel %vm111, %v128, 0.0
    %130 = vadd.xlane.f32.xlu0 %v129
    %v131 = vpop.xlane.xlu0 %130
    %v132 = vadd.f32 %v120, %v131
    %vm133 = vcmask 7168
    %134 = vst.msk [vmem:[#allocation3] sm:$0xff] %vm133, %v132
    %135 = vst.msk [vmem:[#allocation2] sm:$0xff] %vm133, %v115
    // Predicated region
    $region26: #{tpu_custom_call.1} parent=1 // pred_check
      %p136 = pneg %p39
    $region27: #{tpu_custom_call.1} parent=1 // pred_check_branch
      %138 = sbr.rel (%p136) target = $region29
    $region28: #{tpu_custom_call.1} parent=1 // pred_region
      %v139 = vld [vmem:[#allocation2] sm:$0xff]
      %v140 = vld [vmem:[#allocation3] sm:$0xff]
      %v141 = vlog2.pop %v140
      %v142 = vmul.f32 %v141, 0.6931472
      %v143 = vadd.f32 %v139, %v142
      %v144 = vld [vmem:[#allocation4] sm:$0xff]
      %v145 = vsub.f32 %v143, %v144
      %146 = vst.msk [vmem:[%s2] sm:$0xff] %vm133, %v145
    $region29: #{tpu_custom_call.1} parent=1 // pred_fallthru
      _
    // Predicated region
    $region30: #{tpu_custom_call.1} parent=1 // pred_check
      _
    $region31: #{tpu_custom_call.1} parent=1 // pred_check_branch
      %148 = sbr.rel (0) target = $region33
    $region32: #{tpu_custom_call.1} parent=1 // pred_region
      _
    $region33: #{tpu_custom_call.1} parent=1 // pred_fallthru
      _
    // Predicated region
    $region34: #{tpu_custom_call.1} parent=1 // pred_check
      _
    $region35: #{tpu_custom_call.1} parent=1 // pred_check_branch
      %150 = sbr.rel (0) target = $region37
    $region36: #{tpu_custom_call.1} parent=1 // pred_region
      _
    $region37: #{tpu_custom_call.1} parent=1 // pred_fallthru
      _
    %151 = vsyncpa [#allocation6], 1
    %152 = vsyncpa [#allocation8], 1

</llo_original>
